<compile_context>
chip_gen: v5e
topology: v5e:2x2
jax: 0.10.0
libtpu: 0.0.40
codegen_flags: <defaults>
</compile_context>

<pallas_src>
import jax
import jax.numpy as jnp
from jax.experimental import pallas as pl
from jax.experimental.pallas import tpu as pltpu

# Constants from torchvggish vggish_params (utils.* in the reference).
EMBEDDING_SIZE = 128
QUANTIZE_MIN_VAL = -2.0
QUANTIZE_MAX_VAL = +2.0

VMEM_LIMIT = 32 * 1024 * 1024   # < 64 MiB physical VMEM on v7x -> headroom


def _round_up(x, m):
    return ((x + m - 1) // m) * m


# ----------------------------- fused kernel ---------------------------------
def postprocess_kernel(x_ref, et_ref, mean_ref, o_ref):
    # x_ref:    (TB, 128)  embeddings tile
    # et_ref:   (128, 128) pca_eigen_vectors^T (so kernel computes x @ E^T)
    # mean_ref: (1, 128)   pca_means^T (row vector, broadcast over batch)
    # o_ref:    (TB, 128)  quantized embeddings (float values in [0, 255])
    centered = x_ref[...] - mean_ref[...]                       # VPU
    pca = jnp.dot(centered, et_ref[...],
                  preferred_element_type=jnp.float32)           # MXU
    clipped = jnp.clip(pca, QUANTIZE_MIN_VAL, QUANTIZE_MAX_VAL)
    scale = 255.0 / (QUANTIZE_MAX_VAL - QUANTIZE_MIN_VAL)
    o_ref[...] = jnp.round((clipped - QUANTIZE_MIN_VAL) * scale)


def vggish_postprocess(x, pca_eigen_vectors, pca_means, *, tb=512):
    """Applies PCA (with whitening) + 8-bit quantization, exactly like
    Postprocessor.forward. x: (B, 128) float embeddings."""
    assert x.ndim == 2, f"Expected 2-d batch, got {x.shape}"
    assert x.shape[1] == EMBEDDING_SIZE, f"Bad batch shape: {x.shape}"
    B, D = x.shape

    x = x.astype(jnp.float32)
    et = jnp.transpose(pca_eigen_vectors.astype(jnp.float32))   # (D, D) = E^T
    mean_row = pca_means.astype(jnp.float32).reshape(1, D)      # (1, D) = m^T

    # Tile the batch; keep sublane dim a multiple of 8.
    tb = min(tb, _round_up(B, 8))
    Bp = _round_up(B, tb)
    if Bp != B:
        x = jnp.pad(x, ((0, Bp - B), (0, 0)))

    out = pl.pallas_call(
        postprocess_kernel,
        out_shape=jax.ShapeDtypeStruct((Bp, D), jnp.float32),
        grid_spec=pltpu.PrefetchScalarGridSpec(
            num_scalar_prefetch=0,
            grid=(Bp // tb,),
            in_specs=[
                pl.BlockSpec((tb, D), lambda i: (i, 0)),   # embeddings tile
                pl.BlockSpec((D, D), lambda i: (0, 0)),    # E^T (resident)
                pl.BlockSpec((1, D), lambda i: (0, 0)),    # means row
            ],
            out_specs=pl.BlockSpec((tb, D), lambda i: (i, 0)),
        ),
        compiler_params=pltpu.CompilerParams(
            dimension_semantics=("parallel",),
            vmem_limit_bytes=VMEM_LIMIT),
    )(x, et, mean_row)

    out = out[:B]
    return jnp.squeeze(out)   # matches torch.squeeze in the reference


# --------------------------------- demo -------------------------------------
if __name__ == "__main__":
    key = jax.random.PRNGKey(0)
    kx, ke, km = jax.random.split(key, 3)

    BATCH = 16
    # TODO(synk): the real pca_eigen_vectors / pca_means are pretrained params
    # loaded via torch.hub (file/network I/O); here they are deterministic
    # random stand-ins with matching shapes.
    x = jax.random.normal(kx, (BATCH, EMBEDDING_SIZE), jnp.float32)
    pca_eigen_vectors = (jax.random.normal(
        ke, (EMBEDDING_SIZE, EMBEDDING_SIZE), jnp.float32)
        / jnp.sqrt(EMBEDDING_SIZE))
    pca_means = jax.random.normal(km, (EMBEDDING_SIZE, 1), jnp.float32) * 0.1

    fwd = jax.jit(vggish_postprocess)
    out = jax.block_until_ready(fwd(x, pca_eigen_vectors, pca_means))

    # Pure-JAX reference mirroring the torch module op-for-op.
    pca_ref = jnp.matmul(pca_eigen_vectors, x.T - pca_means).T
    clipped_ref = jnp.clip(pca_ref, QUANTIZE_MIN_VAL, QUANTIZE_MAX_VAL)
    ref = jnp.squeeze(jnp.round(
        (clipped_ref - QUANTIZE_MIN_VAL)
        * (255.0 / (QUANTIZE_MAX_VAL - QUANTIZE_MIN_VAL))))

    assert out.shape == (BATCH, EMBEDDING_SIZE), out.shape
    assert bool(jnp.all(jnp.isfinite(out)))
    assert bool(jnp.all((out >= 0.0) & (out <= 255.0)))
    # Rounding may differ by at most 1 LSB at exact .5 boundaries if the MXU
    # contraction order differs from XLA's.
    assert float(jnp.max(jnp.abs(out - ref))) <= 1.0
    print("KERNEL_OK")
</pallas_src>

<mosaic_0001>
module attributes {stable_mosaic.version = 11 : i64} {
  func.func @postprocess_kernel(%arg0: i32, %arg1: memref<16x128xf32, #tpu.memory_space<vmem>>, %arg2: memref<128x128xf32, #tpu.memory_space<vmem>>, %arg3: memref<1x128xf32, #tpu.memory_space<vmem>>, %arg4: memref<16x128xf32, #tpu.memory_space<vmem>>) attributes {dimension_semantics = [#tpu.dimension_semantics<parallel>], iteration_bounds = array<i64: 1>, scalar_prefetch = 0 : i64, scratch_operands = 0 : i64, tpu.core_type = #tpu.core_type<tc>, window_params = [{transform_indices = @transform_0, window_bounds = array<i64: 16, 128>}, {pipeline_mode = #tpu.pipeline_mode<synchronous>, transform_indices = @transform_1, window_bounds = array<i64: 128, 128>}, {pipeline_mode = #tpu.pipeline_mode<synchronous>, transform_indices = @transform_2, window_bounds = array<i64: 1, 128>}, {transform_indices = @transform_3, window_bounds = array<i64: 16, 128>}]} {
    %c0 = arith.constant 0 : index
    %c0_0 = arith.constant 0 : index
    %0 = vector.load %arg1[%c0, %c0_0] : memref<16x128xf32, #tpu.memory_space<vmem>>, vector<16x128xf32>
    %c0_1 = arith.constant 0 : index
    %c0_2 = arith.constant 0 : index
    %1 = vector.load %arg3[%c0_1, %c0_2] : memref<1x128xf32, #tpu.memory_space<vmem>>, vector<1x128xf32>
    %2 = vector.broadcast %1 : vector<1x128xf32> to vector<16x128xf32>
    %3 = arith.subf %0, %2 : vector<16x128xf32>
    %c0_3 = arith.constant 0 : index
    %c0_4 = arith.constant 0 : index
    %4 = vector.load %arg2[%c0_3, %c0_4] : memref<128x128xf32, #tpu.memory_space<vmem>>, vector<128x128xf32>
    %cst = arith.constant dense<0.000000e+00> : vector<16x128xf32>
    %5 = tpu.matmul %3, %4, %cst {dimension_numbers = #tpu.dot_dimension_numbers<[1], [0], [0], [1], [0, 0, 1, 1], [], []>} : vector<16x128xf32>, vector<128x128xf32>, vector<16x128xf32> -> vector<16x128xf32>
    %cst_5 = arith.constant -2.000000e+00 : f32
    %cst_6 = arith.constant 2.000000e+00 : f32
    %6 = vector.broadcast %cst_5 : f32 to vector<16x128xf32>
    %7 = arith.maximumf %6, %5 : vector<16x128xf32>
    %8 = vector.broadcast %cst_6 : f32 to vector<16x128xf32>
    %9 = arith.minimumf %8, %7 : vector<16x128xf32>
    %cst_7 = arith.constant -2.000000e+00 : f32
    %10 = vector.broadcast %cst_7 : f32 to vector<16x128xf32>
    %11 = arith.subf %9, %10 : vector<16x128xf32>
    %cst_8 = arith.constant 6.375000e+01 : f32
    %12 = vector.broadcast %cst_8 : f32 to vector<16x128xf32>
    %13 = arith.mulf %11, %12 : vector<16x128xf32>
    %14 = math.roundeven %13 : vector<16x128xf32>
    %c0_9 = arith.constant 0 : index
    %c0_10 = arith.constant 0 : index
    %15 = vector.load %arg4[%c0_9, %c0_10] : memref<16x128xf32, #tpu.memory_space<vmem>>, vector<16x128xf32>
    tpu.vector_store %arg4[%c0_9, %c0_10], %14 {strides = array<i32>} : memref<16x128xf32, #tpu.memory_space<vmem>>, vector<16x128xf32>,
    return
  }
  func.func @transform_0(%arg0: i32) -> (i32, i32) {
    %c0_i32 = arith.constant 0 : i32
    %c0_i32_0 = arith.constant 0 : i32
    return %arg0, %c0_i32 : i32, i32
  }
  func.func @transform_1(%arg0: i32) -> (i32, i32) {
    %c0_i32 = arith.constant 0 : i32
    %c0_i32_0 = arith.constant 0 : i32
    %c0_i32_1 = arith.constant 0 : i32
    return %c0_i32, %c0_i32_0 : i32, i32
  }
  func.func @transform_2(%arg0: i32) -> (i32, i32) {
    %c0_i32 = arith.constant 0 : i32
    %c0_i32_0 = arith.constant 0 : i32
    %c0_i32_1 = arith.constant 0 : i32
    return %c0_i32, %c0_i32_0 : i32, i32
  }
  func.func @transform_3(%arg0: i32) -> (i32, i32) {
    %c0_i32 = arith.constant 0 : i32
    %c0_i32_0 = arith.constant 0 : i32
    return %arg0, %c0_i32 : i32, i32
  }
}

</mosaic_0001>

<llo_original>
// kernel: vggish_postprocess.1
$region0: #{vggish_postprocess.1}
  #allocation0 [shape = 'u32[]', space=smem, size = 0x4, offset = 0x4, fixed_abs, tag = 'smem constant byte address 0x4 - core index']
  #allocation1 [shape = 'u32[72,128]{1,0:T(1,128)}', space=vmem, size = 0x9000, scoped, tag = 'internal scratch']
  %s0 = inlined_call_operand.vmem [shape: f32[16,128], index: 0, kind: input, shape index: {}]
  %s1 = inlined_call_operand.vmem [shape: f32[128,128], index: 1, kind: input, shape index: {}]
  %s2 = inlined_call_operand.vmem [shape: f32[1,128], index: 2, kind: input, shape index: {}]
  %s3 = inlined_call_operand.hbm [shape: f32[16,128], index: 3, kind: output, shape index: {}]
  %s4 = sld [smem:[#allocation0]]
  $region22: #{vggish_postprocess.1} parent=0
    _
  %s6 = ssub.s32 1, %s4
  %s7 = scalar_select 0, %s6, %s4
  $region1: #{vggish_postprocess.1} parent=0
    #allocation2 [shape = 'u8[8192]{0}', space=vmem, size = 0x2000, scoped, tag = 'output window, operand 0, single buffered']
    #allocation3 [shape = 's32[1]{0}', space=sflag, size = 0x4, scoped, tag = 'scoped memory for vggish_postprocess.1']
    %8 = vsyncpa [#allocation3], 0
    // Predicated region
    $region2: #{vggish_postprocess.1} parent=1 // pred_check
      _
    $region3: #{vggish_postprocess.1} parent=1 // pred_check_branch
      %10 = sbr.rel (0) target = $region5
    $region4: #{vggish_postprocess.1} parent=1 // pred_region
      _
    $region5: #{vggish_postprocess.1} parent=1 // pred_fallthru
      _
    // Predicated region
    $region6: #{vggish_postprocess.1} parent=1 // pred_check
      _
    $region7: #{vggish_postprocess.1} parent=1 // pred_check_branch
      %12 = sbr.rel (0) target = $region9
    $region8: #{vggish_postprocess.1} parent=1 // pred_region
      _
    $region9: #{vggish_postprocess.1} parent=1 // pred_fallthru
      _
    // Predicated region
    $region10: #{vggish_postprocess.1} parent=1 // pred_check
      _
    $region11: #{vggish_postprocess.1} parent=1 // pred_check_branch
      %14 = sbr.rel (0) target = $region13
    $region12: #{vggish_postprocess.1} parent=1 // pred_region
      _
    $region13: #{vggish_postprocess.1} parent=1 // pred_fallthru
      _
    %v15 = vld [vmem:[%s0] sm:$0xff]
    %v16 = vld [vmem:[%s0 + $0x8] sm:$0xff]
    %v17 = vld [vmem:[%s2] sm:$0x1]
    %v19 = vperm.slane %v17, 0
    %v21 = vsub.f32 %v15, %v19
    %v22 = vsub.f32 %v16, %v19
    %v23 = vld [vmem:[%s1] sm:$0xff]
    %v24 = vld [vmem:[%s1 + $0x8] sm:$0xff]
    %v25 = vld [vmem:[%s1 + $0x10] sm:$0xff]
    %v26 = vld [vmem:[%s1 + $0x18] sm:$0xff]
    %v27 = vld [vmem:[%s1 + $0x20] sm:$0xff]
    %v28 = vld [vmem:[%s1 + $0x28] sm:$0xff]
    %v29 = vld [vmem:[%s1 + $0x30] sm:$0xff]
    %v30 = vld [vmem:[%s1 + $0x38] sm:$0xff]
    %v31 = vld [vmem:[%s1 + $0x40] sm:$0xff]
    %v32 = vld [vmem:[%s1 + $0x48] sm:$0xff]
    %v33 = vld [vmem:[%s1 + $0x50] sm:$0xff]
    %v34 = vld [vmem:[%s1 + $0x58] sm:$0xff]
    %v35 = vld [vmem:[%s1 + $0x60] sm:$0xff]
    %v36 = vld [vmem:[%s1 + $0x68] sm:$0xff]
    %v37 = vld [vmem:[%s1 + $0x70] sm:$0xff]
    %v38 = vld [vmem:[%s1 + $0x78] sm:$0xff]
    %39 = vmatpush.msra.mxu0 %v38
    %40 = vmatpush.msra.mxu0 %v37
    %41 = vmatpush.msra.mxu0 %v36
    %42 = vmatpush.msra.mxu0 %v35
    %43 = vmatpush.msra.mxu0 %v34
    %44 = vmatpush.msra.mxu0 %v33
    %45 = vmatpush.msra.mxu0 %v32
    %46 = vmatpush.msra.mxu0 %v31
    %47 = vmatpush.msra.mxu0 %v30
    %48 = vmatpush.msra.mxu0 %v29
    %49 = vmatpush.msra.mxu0 %v28
    %50 = vmatpush.msra.mxu0 %v27
    %51 = vmatpush.msra.mxu0 %v26
    %52 = vmatpush.msra.mxu0 %v25
    %53 = vmatpush.msra.mxu0 %v24
    %54 = vmatpush.msra.mxu0 %v23
    %55 = vmatmul.f32.gmra.mxu0 %v21
    %v56 = vpop.f32.mrf.mxu0
    %v57 = vadd.f32 0.0, %v56
    %58 = vmatmul.f32.gmra.mxu0 %v22
    %v59 = vpop.f32.mrf.mxu0
    %v60 = vadd.f32 0.0, %v59
    %61 = vdwg.mxu0
    %v62 = vmax.f32 %v57, -2.0
    %v63 = vmax.f32 %v60, -2.0
    %v64 = vmin.f32 %v62, 2.0
    %v65 = vmin.f32 %v63, 2.0
    %v66 = vsub.f32 %v64, -2.0
    %v67 = vsub.f32 %v65, -2.0
    %v68 = vmul.f32 %v66, 63.75
    %v69 = vmul.f32 %v67, 63.75
    %v70 = vround.ne.pseudo %v68
    %v71 = vround.ne.pseudo %v69
    %72 = vst [vmem:[#allocation2] sm:$0xff] %v70
    %73 = vst [vmem:[#allocation2 + $0x8] sm:$0xff] %v71
    // Predicated region
    $region14: #{vggish_postprocess.1} parent=1 // pred_check
      _
    $region15: #{vggish_postprocess.1} parent=1 // pred_check_branch
      %75 = sbr.rel (0) target = $region17
    $region16: #{vggish_postprocess.1} parent=1 // pred_region
      %77 = vsyncadd [#allocation3], 0
      %s78 = sshll.u32 [#allocation2], 4
      %s79 = int_to_ptr.vmem [resolvable:$true] %s78
      %s80 = sshll.u32 %s3, 4
      %s81 = int_to_ptr.hbm [resolvable:$true] %s80
      %86 = dma.vmem_to_hbm [thread:$0]  %s79, 256, %s81, [#allocation3], 128, 128, 8
    $region17: #{vggish_postprocess.1} parent=1 // pred_fallthru
      _
    // Predicated region
    $region18: #{vggish_postprocess.1} parent=1 // pred_check
      _
    $region19: #{vggish_postprocess.1} parent=1 // pred_check_branch
      %88 = sbr.rel (0) target = $region21
    $region20: #{vggish_postprocess.1} parent=1 // pred_region
      %90 = dma.done [#allocation3], 256
    $region21: #{vggish_postprocess.1} parent=1 // pred_fallthru
      _
    %91 = vsyncpa [#allocation3], 1

</llo_original>
